<compile_context>
chip_gen: v7x
topology: tpu7x:2x2x1
jax: 0.10.0
libtpu: 0.0.40
codegen_flags: <defaults>
</compile_context>

<pallas_src>
import jax
import jax.numpy as jnp
from jax import lax
from jax.experimental import pallas as pl
from jax.experimental.pallas import tpu as pltpu

EPS = 1e-5


def _round_up(v, m):
    return (v + m - 1) // m * m


def _make_kernel(*, Co, Wo, M, stride1, use_1x1conv):
    inv_m = 1.0 / M
    # tap index t = kh*3 + kw ; flat source offset of that tap on the (N*Ho*Wo) axis
    offs = [(kh * 3 + kw, (kh - 1) * Wo + (kw - 1))
            for kh in range(3) for kw in range(3)]

    def kernel(*refs):
        it = iter(refs)
        x1_ref = next(it)        # stride1: (Ci, M) f32 base ; else (9*Ci, M) bf16 im2col
        tmask_ref = next(it)     # (9, M) f32 {0,1} tap boundary masks (load-bearing!)
        wstk_ref = next(it)      # (2*Co | Co, 9*Ci) bf16: w1 rows, then fused-w3 rows
        g1_ref = next(it); bt1_ref = next(it)
        w2_ref = next(it)        # (Co, 9*Co) bf16
        g2_ref = next(it); bt2_ref = next(it)
        b3_ref = next(it) if use_1x1conv else None
        out_ref = next(it)       # (Co, M) f32, lane-dense

        def slab_bf16(base):
            # base: (C, M) f32 with C % 8 == 0.  The 9 im2col taps are built as
            # pltpu.roll's of the in-register base (XLU slot — no halo buffer, no
            # misaligned loads, no partial stores); wrapped/OOB lanes are zeroed
            # by tmask; the tile-aligned f32 pieces are concatenated in vregs and
            # cast to bf16 once for the MXU.
            pieces = []
            for t, off in offs:
                if off == 0:
                    p = base                                   # center tap: always in-bounds
                else:
                    p = pltpu.roll(base, shift=(-off) % M, axis=1) * tmask_ref[t:t + 1, :]
                pieces.append(p)
            return jnp.concatenate(pieces, axis=0).astype(jnp.bfloat16)

        def bn(acc, g_ref, bt_ref):
            # Training-mode BatchNorm folded to one scale/shift per channel.
            # TODO(synk): one-pass E[x^2]-mean^2 variance; use a centered/two-pass
            #             form if tolerances tighten at production scales.
            mean = jnp.sum(acc, axis=1, keepdims=True) * inv_m
            var = jnp.sum(acc * acc, axis=1, keepdims=True) * inv_m - mean * mean
            scale = g_ref[...] * lax.rsqrt(var + EPS)
            shift = bt_ref[...] - mean * scale
            return acc * scale + shift

        # ---- conv1 (+ fused 1x1-conv skip): ONE (2Co, 9Ci) x (9Ci, M) MXU matmul ----
        # (conv biases b1/b2 omitted on purpose: bias-then-BatchNorm cancels exactly)
        if stride1:
            base1 = x1_ref[...]                                # (Ci, M) f32
            slab1 = slab_bf16(base1)
        else:
            slab1 = x1_ref[...]                                # wrapper-built strided im2col
        big = jnp.dot(wstk_ref[...], slab1, preferred_element_type=jnp.float32)
        acc1 = big[:Co, :]

        # ---- BN1 + ReLU ----
        y = jnp.maximum(bn(acc1, g1_ref, bt1_ref), 0.0)

        # ---- conv2: ONE (Co, 9Co) x (9Co, M) MXU matmul over roll-built taps ----
        acc2 = jnp.dot(w2_ref[...], slab_bf16(y), preferred_element_type=jnp.float32)
        y2 = bn(acc2, g2_ref, bt2_ref)

        # ---- skip path ----
        if use_1x1conv:
            skip = big[Co:, :] + b3_ref[...]                   # already computed by conv1's dot
        else:
            skip = base1                                       # identity (Ci == Co, stride 1)

        out_ref[...] = jnp.maximum(y2 + skip, 0.0)             # unmasked, lane-dense store

    return kernel


def residual_forward(x_nchw, p, *, strides=1, use_1x1conv=False):
    """Pallas implementation of Residual.forward. x_nchw: (N, Cin, H, W) f32."""
    N, Cin, H, W = x_nchw.shape
    Cm = p["w1"].shape[0]
    Ho = (H + 2 - 3) // strides + 1
    Wo = (W + 2 - 3) // strides + 1
    M = N * Ho * Wo                    # lane axis; multiple of 128 at these shapes
    if not use_1x1conv:
        assert Cin == Cm and strides == 1, "identity skip needs matching shape"

    # Pad channel counts to multiples of 8 so every in-kernel tap block is a full
    # f32 sublane tile (tile-aligned vreg concat; no masked sublane ops anywhere).
    Ci = _round_up(Cin, 8)
    Co = _round_up(Cm, 8)

    x = x_nchw.astype(jnp.float32)
    xcf = jnp.transpose(x, (1, 0, 2, 3))                       # (Cin, N, H, W)
    xcf = jnp.pad(xcf, ((0, Ci - Cin), (0, 0), (0, 0), (0, 0)))

    # (9, M) tap masks: 1.0 where the tap's source pixel is in-bounds.  They also
    # zero every circular-wrap read of the roll-based taps (load-bearing).
    idx = jnp.arange(M, dtype=jnp.int32)
    wo = idx % Wo
    ho = (idx // Wo) % Ho
    masks = []
    for kh in range(3):
        for kw in range(3):
            dh, dw = kh - 1, kw - 1
            masks.append((ho + dh >= 0) & (ho + dh < Ho) &
                         (wo + dw >= 0) & (wo + dw < Wo))
    tmask = jnp.stack(masks, axis=0).astype(jnp.float32)

    def flat_w(w, ci):  # (Cout, Cin, 3, 3) -> (Co, 9*ci), tap-major / channel-minor
        wp = jnp.pad(w, ((0, Co - w.shape[0]), (0, ci - w.shape[1]), (0, 0), (0, 0)))
        return jnp.transpose(wp, (0, 2, 3, 1)).reshape(Co, 9 * ci)

    def pad_vec(v):     # (Cm,) -> (Co, 1); padded channels get 0 (keeps them inert)
        return jnp.pad(v, (0, Co - Cm)).reshape(Co, 1).astype(jnp.float32)

    w1f = flat_w(p["w1"], Ci)                                  # (Co, 9*Ci)
    if use_1x1conv:
        # Fuse conv3 (1x1, stride s) into conv1's matmul: its input is exactly the
        # center tap (tap 4) of conv1's im2col, so place w3 in those columns.
        w3p = jnp.pad(p["w3"].reshape(Cm, Cin), ((0, Co - Cm), (0, Ci - Cin)))
        w3row = jnp.zeros((Co, 9 * Ci), jnp.float32).at[:, 4 * Ci:5 * Ci].set(w3p)
        wstk = jnp.concatenate([w1f, w3row], axis=0).astype(jnp.bfloat16)   # (2Co, 9Ci)
    else:
        wstk = w1f.astype(jnp.bfloat16)
    w2f = flat_w(p["w2"], Co).astype(jnp.bfloat16)             # (Co, 9*Co)
    g1, bt1 = pad_vec(p["g1"]), pad_vec(p["bt1"])
    g2, bt2 = pad_vec(p["g2"]), pad_vec(p["bt2"])
    # conv biases b1/b2 are intentionally NOT passed: bias-then-BatchNorm cancels.

    if strides == 1:
        x_in = xcf.reshape(Ci, M)                              # (Ci, M) f32, no halo pad
    else:
        # TODO(synk): at real shapes build this strided im2col in-kernel (strided
        # pl.ds reads) instead of pre-expanding ~9x the conv1 input bytes here.
        xpad = jnp.pad(xcf, ((0, 0), (0, 0), (1, 1), (1, 1)))
        cols = []
        for kh in range(3):
            for kw in range(3):
                patch = xpad[:, :, kh:kh + (Ho - 1) * strides + 1:strides,
                                   kw:kw + (Wo - 1) * strides + 1:strides]
                cols.append(patch.reshape(Ci, M))
        x_in = jnp.concatenate(cols, axis=0).astype(jnp.bfloat16)   # (9*Ci, M) bf16

    args = [x_in, tmask, wstk, g1, bt1, w2f, g2, bt2]
    if use_1x1conv:
        args.append(pad_vec(p["b3"]))

    kernel = _make_kernel(Co=Co, Wo=Wo, M=M,
                          stride1=(strides == 1), use_1x1conv=use_1x1conv)

    # VMEM budget derived from the actual buffers (x2 headroom + compiler scratch),
    # floored at the scoped default and capped at 64 MiB so it is v7x-safe too.
    io_bytes = sum(int(a.size) * a.dtype.itemsize for a in args) + Co * M * 4
    vmem_budget = min(64 << 20, max(32 << 20, 2 * io_bytes + (8 << 20)))

    vmem = pl.BlockSpec(memory_space=pltpu.MemorySpace.VMEM)
    out_cm = pl.pallas_call(
        kernel,
        out_shape=jax.ShapeDtypeStruct((Co, M), jnp.float32),
        in_specs=[vmem] * len(args),
        out_specs=vmem,
        compiler_params=pltpu.CompilerParams(vmem_limit_bytes=vmem_budget),
    )(*args)

    # (Co, M) -> (Cm, N, Ho, Wo) -> NCHW (padded channels dropped)
    return jnp.transpose(out_cm[:Cm].reshape(Cm, N, Ho, Wo), (1, 0, 2, 3))


# ----------------------------- pure-JAX reference -----------------------------
def _conv(x, w, stride, pad):
    return lax.conv_general_dilated(
        x, w, window_strides=(stride, stride),
        padding=((pad, pad), (pad, pad)),
        dimension_numbers=("NCHW", "OIHW", "NCHW"))


def _bn(y, g, b):
    mean = jnp.mean(y, axis=(0, 2, 3), keepdims=True)
    var = jnp.mean((y - mean) ** 2, axis=(0, 2, 3), keepdims=True)
    return ((y - mean) * lax.rsqrt(var + EPS) * g[None, :, None, None]
            + b[None, :, None, None])


def residual_ref(x, p, *, strides=1, use_1x1conv=False):
    y = _conv(x, p["w1"], strides, 1) + p["b1"][None, :, None, None]
    y = jnp.maximum(_bn(y, p["g1"], p["bt1"]), 0.0)
    y = _conv(y, p["w2"], 1, 1) + p["b2"][None, :, None, None]
    y = _bn(y, p["g2"], p["bt2"])
    if use_1x1conv:
        x = _conv(x, p["w3"], strides, 0) + p["b3"][None, :, None, None]
    return jnp.maximum(y + x, 0.0)


# ------------------------------------ main ------------------------------------
if __name__ == "__main__":
    N, Cin, Cm, H, W = 2, 4, 8, 16, 16
    strides, use_1x1conv = 1, True

    key = jax.random.PRNGKey(0)
    ks = jax.random.split(key, 12)
    p = {
        "w1": 0.2 * jax.random.normal(ks[0], (Cm, Cin, 3, 3), jnp.float32),
        "b1": 0.1 * jax.random.normal(ks[1], (Cm,), jnp.float32),
        "w2": 0.2 * jax.random.normal(ks[2], (Cm, Cm, 3, 3), jnp.float32),
        "b2": 0.1 * jax.random.normal(ks[3], (Cm,), jnp.float32),
        "w3": 0.2 * jax.random.normal(ks[4], (Cm, Cin, 1, 1), jnp.float32),
        "b3": 0.1 * jax.random.normal(ks[5], (Cm,), jnp.float32),
        "g1": 1.0 + 0.1 * jax.random.normal(ks[6], (Cm,), jnp.float32),
        "bt1": 0.1 * jax.random.normal(ks[7], (Cm,), jnp.float32),
        "g2": 1.0 + 0.1 * jax.random.normal(ks[8], (Cm,), jnp.float32),
        "bt2": 0.1 * jax.random.normal(ks[9], (Cm,), jnp.float32),
    }
    x = jax.random.normal(ks[10], (N, Cin, H, W), jnp.float32)

    out = residual_forward(x, p, strides=strides, use_1x1conv=use_1x1conv)
    out = jax.block_until_ready(out)

    ref = residual_ref(x, p, strides=strides, use_1x1conv=use_1x1conv)
    assert out.shape == ref.shape
    assert bool(jnp.allclose(out, ref, atol=5e-2, rtol=5e-2)), (
        "mismatch vs reference: max abs err "
        f"{float(jnp.max(jnp.abs(out - ref)))}")

    print("KERNEL_OK")
</pallas_src>

<mosaic_0001>
module attributes {stable_mosaic.version = 11 : i64} {
  func.func @kernel(%arg0: memref<8x512xf32, #tpu.memory_space<vmem>>, %arg1: memref<9x512xf32, #tpu.memory_space<vmem>>, %arg2: memref<16x72xbf16, #tpu.memory_space<vmem>>, %arg3: memref<8x1xf32, #tpu.memory_space<vmem>>, %arg4: memref<8x1xf32, #tpu.memory_space<vmem>>, %arg5: memref<8x72xbf16, #tpu.memory_space<vmem>>, %arg6: memref<8x1xf32, #tpu.memory_space<vmem>>, %arg7: memref<8x1xf32, #tpu.memory_space<vmem>>, %arg8: memref<8x1xf32, #tpu.memory_space<vmem>>, %arg9: memref<8x512xf32, #tpu.memory_space<vmem>>) attributes {dimension_semantics = [], scalar_prefetch = 0 : i64, scratch_operands = 0 : i64, tpu.core_type = #tpu.core_type<tc>} {
    %c0 = arith.constant 0 : index
    %c0_0 = arith.constant 0 : index
    %0 = vector.load %arg0[%c0, %c0_0] : memref<8x512xf32, #tpu.memory_space<vmem>>, vector<8x512xf32>
    %c17_i32 = arith.constant 17 : i32
    %1 = tpu.dynamic_rotate %0 by %c17_i32 dim 1 : vector<8x512xf32>, i32 -> vector<8x512xf32>
    %c0_1 = arith.constant 0 : index
    %c0_2 = arith.constant 0 : index
    %2 = vector.load %arg1[%c0_1, %c0_2] : memref<9x512xf32, #tpu.memory_space<vmem>>, vector<1x512xf32>
    %3 = vector.broadcast %2 : vector<1x512xf32> to vector<8x512xf32>
    %4 = arith.mulf %1, %3 : vector<8x512xf32>
    %c16_i32 = arith.constant 16 : i32
    %5 = tpu.dynamic_rotate %0 by %c16_i32 dim 1 : vector<8x512xf32>, i32 -> vector<8x512xf32>
    %c1 = arith.constant 1 : index
    %c0_3 = arith.constant 0 : index
    %6 = vector.load %arg1[%c1, %c0_3] : memref<9x512xf32, #tpu.memory_space<vmem>>, vector<1x512xf32>
    %7 = vector.broadcast %6 : vector<1x512xf32> to vector<8x512xf32>
    %8 = arith.mulf %5, %7 : vector<8x512xf32>
    %c15_i32 = arith.constant 15 : i32
    %9 = tpu.dynamic_rotate %0 by %c15_i32 dim 1 : vector<8x512xf32>, i32 -> vector<8x512xf32>
    %c2 = arith.constant 2 : index
    %c0_4 = arith.constant 0 : index
    %10 = vector.load %arg1[%c2, %c0_4] : memref<9x512xf32, #tpu.memory_space<vmem>>, vector<1x512xf32>
    %11 = vector.broadcast %10 : vector<1x512xf32> to vector<8x512xf32>
    %12 = arith.mulf %9, %11 : vector<8x512xf32>
    %c1_i32 = arith.constant 1 : i32
    %13 = tpu.dynamic_rotate %0 by %c1_i32 dim 1 : vector<8x512xf32>, i32 -> vector<8x512xf32>
    %c3 = arith.constant 3 : index
    %c0_5 = arith.constant 0 : index
    %14 = vector.load %arg1[%c3, %c0_5] : memref<9x512xf32, #tpu.memory_space<vmem>>, vector<1x512xf32>
    %15 = vector.broadcast %14 : vector<1x512xf32> to vector<8x512xf32>
    %16 = arith.mulf %13, %15 : vector<8x512xf32>
    %c511_i32 = arith.constant 511 : i32
    %17 = tpu.dynamic_rotate %0 by %c511_i32 dim 1 : vector<8x512xf32>, i32 -> vector<8x512xf32>
    %c5 = arith.constant 5 : index
    %c0_6 = arith.constant 0 : index
    %18 = vector.load %arg1[%c5, %c0_6] : memref<9x512xf32, #tpu.memory_space<vmem>>, vector<1x512xf32>
    %19 = vector.broadcast %18 : vector<1x512xf32> to vector<8x512xf32>
    %20 = arith.mulf %17, %19 : vector<8x512xf32>
    %c497_i32 = arith.constant 497 : i32
    %21 = tpu.dynamic_rotate %0 by %c497_i32 dim 1 : vector<8x512xf32>, i32 -> vector<8x512xf32>
    %c6 = arith.constant 6 : index
    %c0_7 = arith.constant 0 : index
    %22 = vector.load %arg1[%c6, %c0_7] : memref<9x512xf32, #tpu.memory_space<vmem>>, vector<1x512xf32>
    %23 = vector.broadcast %22 : vector<1x512xf32> to vector<8x512xf32>
    %24 = arith.mulf %21, %23 : vector<8x512xf32>
    %c496_i32 = arith.constant 496 : i32
    %25 = tpu.dynamic_rotate %0 by %c496_i32 dim 1 : vector<8x512xf32>, i32 -> vector<8x512xf32>
    %c7 = arith.constant 7 : index
    %c0_8 = arith.constant 0 : index
    %26 = vector.load %arg1[%c7, %c0_8] : memref<9x512xf32, #tpu.memory_space<vmem>>, vector<1x512xf32>
    %27 = vector.broadcast %26 : vector<1x512xf32> to vector<8x512xf32>
    %28 = arith.mulf %25, %27 : vector<8x512xf32>
    %c495_i32 = arith.constant 495 : i32
    %29 = tpu.dynamic_rotate %0 by %c495_i32 dim 1 : vector<8x512xf32>, i32 -> vector<8x512xf32>
    %c8 = arith.constant 8 : index
    %c0_9 = arith.constant 0 : index
    %30 = vector.load %arg1[%c8, %c0_9] : memref<9x512xf32, #tpu.memory_space<vmem>>, vector<1x512xf32>
    %31 = vector.broadcast %30 : vector<1x512xf32> to vector<8x512xf32>
    %32 = arith.mulf %29, %31 : vector<8x512xf32>
    %33 = tpu.concatenate %4, %8, %12, %16, %0, %20, %24, %28, %32 in 0 : vector<8x512xf32>, vector<8x512xf32>, vector<8x512xf32>, vector<8x512xf32>, vector<8x512xf32>, vector<8x512xf32>, vector<8x512xf32>, vector<8x512xf32>, vector<8x512xf32> -> vector<72x512xf32>
    %34 = arith.truncf %33 : vector<72x512xf32> to vector<72x512xbf16>
    %c0_10 = arith.constant 0 : index
    %c0_11 = arith.constant 0 : index
    %35 = vector.load %arg2[%c0_10, %c0_11] : memref<16x72xbf16, #tpu.memory_space<vmem>>, vector<16x72xbf16>
    %cst = arith.constant dense<0.000000e+00> : vector<16x512xf32>
    %36 = tpu.matmul %35, %34, %cst {dimension_numbers = #tpu.dot_dimension_numbers<[1], [0], [0], [1], [0, 0, 1, 1], [], []>} : vector<16x72xbf16>, vector<72x512xbf16>, vector<16x512xf32> -> vector<16x512xf32>
    %37 = vector.extract_strided_slice %36 {offsets = [0, 0], sizes = [8, 512], strides = [1, 1]} : vector<16x512xf32> to vector<8x512xf32>
    %cst_12 = arith.constant dense<0.000000e+00> : vector<8xf32>
    %38 = vector.multi_reduction <add>, %37, %cst_12 [1] : vector<8x512xf32> to vector<8xf32>
    %39 = vector.shape_cast %38 : vector<8xf32> to vector<8x1xf32>
    %cst_13 = arith.constant 0.001953125 : f32
    %40 = vector.broadcast %cst_13 : f32 to vector<8x1xf32>
    %41 = arith.mulf %39, %40 : vector<8x1xf32>
    %42 = arith.mulf %37, %37 : vector<8x512xf32>
    %cst_14 = arith.constant dense<0.000000e+00> : vector<8xf32>
    %43 = vector.multi_reduction <add>, %42, %cst_14 [1] : vector<8x512xf32> to vector<8xf32>
    %44 = vector.shape_cast %43 : vector<8xf32> to vector<8x1xf32>
    %cst_15 = arith.constant 0.001953125 : f32
    %45 = vector.broadcast %cst_15 : f32 to vector<8x1xf32>
    %46 = arith.mulf %44, %45 : vector<8x1xf32>
    %47 = arith.mulf %41, %41 : vector<8x1xf32>
    %48 = arith.subf %46, %47 : vector<8x1xf32>
    %c0_16 = arith.constant 0 : index
    %c0_17 = arith.constant 0 : index
    %49 = vector.load %arg3[%c0_16, %c0_17] : memref<8x1xf32, #tpu.memory_space<vmem>>, vector<8x1xf32>
    %cst_18 = arith.constant 9.99999974E-6 : f32
    %50 = vector.broadcast %cst_18 : f32 to vector<8x1xf32>
    %51 = arith.addf %48, %50 : vector<8x1xf32>
    %52 = math.rsqrt %51 : vector<8x1xf32>
    %53 = arith.mulf %49, %52 : vector<8x1xf32>
    %c0_19 = arith.constant 0 : index
    %c0_20 = arith.constant 0 : index
    %54 = vector.load %arg4[%c0_19, %c0_20] : memref<8x1xf32, #tpu.memory_space<vmem>>, vector<8x1xf32>
    %55 = arith.mulf %41, %53 : vector<8x1xf32>
    %56 = arith.subf %54, %55 : vector<8x1xf32>
    %57 = vector.broadcast %53 : vector<8x1xf32> to vector<8x512xf32>
    %58 = arith.mulf %37, %57 : vector<8x512xf32>
    %59 = vector.broadcast %56 : vector<8x1xf32> to vector<8x512xf32>
    %60 = arith.addf %58, %59 : vector<8x512xf32>
    %cst_21 = arith.constant 0.000000e+00 : f32
    %61 = vector.broadcast %cst_21 : f32 to vector<8x512xf32>
    %62 = arith.maximumf %60, %61 : vector<8x512xf32>
    %c0_22 = arith.constant 0 : index
    %c0_23 = arith.constant 0 : index
    %63 = vector.load %arg5[%c0_22, %c0_23] : memref<8x72xbf16, #tpu.memory_space<vmem>>, vector<8x72xbf16>
    %c17_i32_24 = arith.constant 17 : i32
    %64 = tpu.dynamic_rotate %62 by %c17_i32_24 dim 1 : vector<8x512xf32>, i32 -> vector<8x512xf32>
    %c0_25 = arith.constant 0 : index
    %c0_26 = arith.constant 0 : index
    %65 = vector.load %arg1[%c0_25, %c0_26] : memref<9x512xf32, #tpu.memory_space<vmem>>, vector<1x512xf32>
    %66 = vector.broadcast %65 : vector<1x512xf32> to vector<8x512xf32>
    %67 = arith.mulf %64, %66 : vector<8x512xf32>
    %c16_i32_27 = arith.constant 16 : i32
    %68 = tpu.dynamic_rotate %62 by %c16_i32_27 dim 1 : vector<8x512xf32>, i32 -> vector<8x512xf32>
    %c1_28 = arith.constant 1 : index
    %c0_29 = arith.constant 0 : index
    %69 = vector.load %arg1[%c1_28, %c0_29] : memref<9x512xf32, #tpu.memory_space<vmem>>, vector<1x512xf32>
    %70 = vector.broadcast %69 : vector<1x512xf32> to vector<8x512xf32>
    %71 = arith.mulf %68, %70 : vector<8x512xf32>
    %c15_i32_30 = arith.constant 15 : i32
    %72 = tpu.dynamic_rotate %62 by %c15_i32_30 dim 1 : vector<8x512xf32>, i32 -> vector<8x512xf32>
    %c2_31 = arith.constant 2 : index
    %c0_32 = arith.constant 0 : index
    %73 = vector.load %arg1[%c2_31, %c0_32] : memref<9x512xf32, #tpu.memory_space<vmem>>, vector<1x512xf32>
    %74 = vector.broadcast %73 : vector<1x512xf32> to vector<8x512xf32>
    %75 = arith.mulf %72, %74 : vector<8x512xf32>
    %c1_i32_33 = arith.constant 1 : i32
    %76 = tpu.dynamic_rotate %62 by %c1_i32_33 dim 1 : vector<8x512xf32>, i32 -> vector<8x512xf32>
    %c3_34 = arith.constant 3 : index
    %c0_35 = arith.constant 0 : index
    %77 = vector.load %arg1[%c3_34, %c0_35] : memref<9x512xf32, #tpu.memory_space<vmem>>, vector<1x512xf32>
    %78 = vector.broadcast %77 : vector<1x512xf32> to vector<8x512xf32>
    %79 = arith.mulf %76, %78 : vector<8x512xf32>
    %c511_i32_36 = arith.constant 511 : i32
    %80 = tpu.dynamic_rotate %62 by %c511_i32_36 dim 1 : vector<8x512xf32>, i32 -> vector<8x512xf32>
    %c5_37 = arith.constant 5 : index
    %c0_38 = arith.constant 0 : index
    %81 = vector.load %arg1[%c5_37, %c0_38] : memref<9x512xf32, #tpu.memory_space<vmem>>, vector<1x512xf32>
    %82 = vector.broadcast %81 : vector<1x512xf32> to vector<8x512xf32>
    %83 = arith.mulf %80, %82 : vector<8x512xf32>
    %c497_i32_39 = arith.constant 497 : i32
    %84 = tpu.dynamic_rotate %62 by %c497_i32_39 dim 1 : vector<8x512xf32>, i32 -> vector<8x512xf32>
    %c6_40 = arith.constant 6 : index
    %c0_41 = arith.constant 0 : index
    %85 = vector.load %arg1[%c6_40, %c0_41] : memref<9x512xf32, #tpu.memory_space<vmem>>, vector<1x512xf32>
    %86 = vector.broadcast %85 : vector<1x512xf32> to vector<8x512xf32>
    %87 = arith.mulf %84, %86 : vector<8x512xf32>
    %c496_i32_42 = arith.constant 496 : i32
    %88 = tpu.dynamic_rotate %62 by %c496_i32_42 dim 1 : vector<8x512xf32>, i32 -> vector<8x512xf32>
    %c7_43 = arith.constant 7 : index
    %c0_44 = arith.constant 0 : index
    %89 = vector.load %arg1[%c7_43, %c0_44] : memref<9x512xf32, #tpu.memory_space<vmem>>, vector<1x512xf32>
    %90 = vector.broadcast %89 : vector<1x512xf32> to vector<8x512xf32>
    %91 = arith.mulf %88, %90 : vector<8x512xf32>
    %c495_i32_45 = arith.constant 495 : i32
    %92 = tpu.dynamic_rotate %62 by %c495_i32_45 dim 1 : vector<8x512xf32>, i32 -> vector<8x512xf32>
    %c8_46 = arith.constant 8 : index
    %c0_47 = arith.constant 0 : index
    %93 = vector.load %arg1[%c8_46, %c0_47] : memref<9x512xf32, #tpu.memory_space<vmem>>, vector<1x512xf32>
    %94 = vector.broadcast %93 : vector<1x512xf32> to vector<8x512xf32>
    %95 = arith.mulf %92, %94 : vector<8x512xf32>
    %96 = tpu.concatenate %67, %71, %75, %79, %62, %83, %87, %91, %95 in 0 : vector<8x512xf32>, vector<8x512xf32>, vector<8x512xf32>, vector<8x512xf32>, vector<8x512xf32>, vector<8x512xf32>, vector<8x512xf32>, vector<8x512xf32>, vector<8x512xf32> -> vector<72x512xf32>
    %97 = arith.truncf %96 : vector<72x512xf32> to vector<72x512xbf16>
    %cst_48 = arith.constant dense<0.000000e+00> : vector<8x512xf32>
    %98 = tpu.matmul %63, %97, %cst_48 {dimension_numbers = #tpu.dot_dimension_numbers<[1], [0], [0], [1], [0, 0, 1, 1], [], []>} : vector<8x72xbf16>, vector<72x512xbf16>, vector<8x512xf32> -> vector<8x512xf32>
    %cst_49 = arith.constant dense<0.000000e+00> : vector<8xf32>
    %99 = vector.multi_reduction <add>, %98, %cst_49 [1] : vector<8x512xf32> to vector<8xf32>
    %100 = vector.shape_cast %99 : vector<8xf32> to vector<8x1xf32>
    %cst_50 = arith.constant 0.001953125 : f32
    %101 = vector.broadcast %cst_50 : f32 to vector<8x1xf32>
    %102 = arith.mulf %100, %101 : vector<8x1xf32>
    %103 = arith.mulf %98, %98 : vector<8x512xf32>
    %cst_51 = arith.constant dense<0.000000e+00> : vector<8xf32>
    %104 = vector.multi_reduction <add>, %103, %cst_51 [1] : vector<8x512xf32> to vector<8xf32>
    %105 = vector.shape_cast %104 : vector<8xf32> to vector<8x1xf32>
    %cst_52 = arith.constant 0.001953125 : f32
    %106 = vector.broadcast %cst_52 : f32 to vector<8x1xf32>
    %107 = arith.mulf %105, %106 : vector<8x1xf32>
    %108 = arith.mulf %102, %102 : vector<8x1xf32>
    %109 = arith.subf %107, %108 : vector<8x1xf32>
    %c0_53 = arith.constant 0 : index
    %c0_54 = arith.constant 0 : index
    %110 = vector.load %arg6[%c0_53, %c0_54] : memref<8x1xf32, #tpu.memory_space<vmem>>, vector<8x1xf32>
    %cst_55 = arith.constant 9.99999974E-6 : f32
    %111 = vector.broadcast %cst_55 : f32 to vector<8x1xf32>
    %112 = arith.addf %109, %111 : vector<8x1xf32>
    %113 = math.rsqrt %112 : vector<8x1xf32>
    %114 = arith.mulf %110, %113 : vector<8x1xf32>
    %c0_56 = arith.constant 0 : index
    %c0_57 = arith.constant 0 : index
    %115 = vector.load %arg7[%c0_56, %c0_57] : memref<8x1xf32, #tpu.memory_space<vmem>>, vector<8x1xf32>
    %116 = arith.mulf %102, %114 : vector<8x1xf32>
    %117 = arith.subf %115, %116 : vector<8x1xf32>
    %118 = vector.broadcast %114 : vector<8x1xf32> to vector<8x512xf32>
    %119 = arith.mulf %98, %118 : vector<8x512xf32>
    %120 = vector.broadcast %117 : vector<8x1xf32> to vector<8x512xf32>
    %121 = arith.addf %119, %120 : vector<8x512xf32>
    %122 = vector.extract_strided_slice %36 {offsets = [8, 0], sizes = [8, 512], strides = [1, 1]} : vector<16x512xf32> to vector<8x512xf32>
    %c0_58 = arith.constant 0 : index
    %c0_59 = arith.constant 0 : index
    %123 = vector.load %arg8[%c0_58, %c0_59] : memref<8x1xf32, #tpu.memory_space<vmem>>, vector<8x1xf32>
    %124 = vector.broadcast %123 : vector<8x1xf32> to vector<8x512xf32>
    %125 = arith.addf %122, %124 : vector<8x512xf32>
    %126 = arith.addf %121, %125 : vector<8x512xf32>
    %cst_60 = arith.constant 0.000000e+00 : f32
    %127 = vector.broadcast %cst_60 : f32 to vector<8x512xf32>
    %128 = arith.maximumf %126, %127 : vector<8x512xf32>
    %c0_61 = arith.constant 0 : index
    %c0_62 = arith.constant 0 : index
    %129 = vector.load %arg9[%c0_61, %c0_62] : memref<8x512xf32, #tpu.memory_space<vmem>>, vector<8x512xf32>
    tpu.vector_store %arg9[%c0_61, %c0_62], %128 {strides = array<i32>} : memref<8x512xf32, #tpu.memory_space<vmem>>, vector<8x512xf32>,
    return
  }
}

</mosaic_0001>

<llo_original>
// kernel: tpu_custom_call.1
$region0: #{tpu_custom_call.1}
  #allocation0 [shape = 'u32[]', space=smem, size = 0x4, offset = 0x4, fixed_abs, tag = 'smem constant byte address 0x4 - core index']
  #allocation1 [shape = 'u32[144,128]{1,0:T(1,128)}', space=vmem, size = 0x12000, scoped, tag = 'internal scratch']
  %s0 = inlined_call_operand.vmem [shape: f32[8,512], index: 0, kind: input, shape index: {}]
  %s1 = inlined_call_operand.hbm [shape: f32[9,512], index: 1, kind: input, shape index: {}]
  %s2 = inlined_call_operand.vmem [shape: bf16[16,72], index: 2, kind: input, shape index: {}]
  %s3 = inlined_call_operand.vmem [shape: f32[8,1], index: 3, kind: input, shape index: {}]
  %s4 = inlined_call_operand.vmem [shape: f32[8,1], index: 4, kind: input, shape index: {}]
  %s5 = inlined_call_operand.vmem [shape: bf16[8,72], index: 5, kind: input, shape index: {}]
  %s6 = inlined_call_operand.vmem [shape: f32[8,1], index: 6, kind: input, shape index: {}]
  %s7 = inlined_call_operand.vmem [shape: f32[8,1], index: 7, kind: input, shape index: {}]
  %s8 = inlined_call_operand.vmem [shape: f32[8,1], index: 8, kind: input, shape index: {}]
  %s9 = inlined_call_operand.hbm [shape: f32[8,512], index: 9, kind: output, shape index: {}]
  %s10 = sld [smem:[#allocation0]]
  $region50: #{tpu_custom_call.1} parent=0
    _
  %s12 = ssub.s32 1, %s10
  %s13 = scalar_select 0, %s12, %s10
  $region1: #{tpu_custom_call.1} parent=0
    #allocation2 [shape = 'u8[32768]{0}', space=vmem, size = 0x8000, scoped, tag = 'input window, operand 1, single buffered']
    #allocation3 [shape = 's32[1]{0}', space=sflag, size = 0x4, scoped, tag = 'scoped memory for tpu_custom_call.1']
    #allocation4 [shape = 's32[1]{0}', space=sflag, size = 0x4, scoped, tag = 'scoped memory for tpu_custom_call.1']
    #allocation5 [shape = 'u8[16384]{0}', space=vmem, size = 0x4000, scoped, tag = 'output window, operand 0, single buffered']
    %14 = vsyncpa [#allocation3], 0
    %15 = vsyncpa [#allocation4], 0
    // Predicated region
    $region2: #{tpu_custom_call.1} parent=1 // pred_check
      _
    $region3: #{tpu_custom_call.1} parent=1 // pred_check_branch
      %17 = sbr.rel (0) target = $region5
    $region4: #{tpu_custom_call.1} parent=1 // pred_region
      _
    $region5: #{tpu_custom_call.1} parent=1 // pred_fallthru
      _
    // Predicated region
    $region6: #{tpu_custom_call.1} parent=1 // pred_check
      _
    $region7: #{tpu_custom_call.1} parent=1 // pred_check_branch
      %19 = sbr.rel (0) target = $region9
    $region8: #{tpu_custom_call.1} parent=1 // pred_region
      %s21 = ssub.s32 1024, 1024
      %22 = vsyncadd [#allocation3], %s21
      %s23 = sshll.u32 [#allocation2], 4
      %s24 = int_to_ptr.vmem [resolvable:$true] %s23
      %29 = dma.hbm_to_vmem [thread:$0]  %s1, 1024, %s24, [#allocation3], 512, 512, 32
    $region9: #{tpu_custom_call.1} parent=1 // pred_fallthru
      _
    // Predicated region
    $region10: #{tpu_custom_call.1} parent=1 // pred_check
      _
    $region11: #{tpu_custom_call.1} parent=1 // pred_check_branch
      %31 = sbr.rel (0) target = $region13
    $region12: #{tpu_custom_call.1} parent=1 // pred_region
      _
    $region13: #{tpu_custom_call.1} parent=1 // pred_fallthru
      _
    // Predicated region
    $region14: #{tpu_custom_call.1} parent=1 // pred_check
      _
    $region15: #{tpu_custom_call.1} parent=1 // pred_check_branch
      %33 = sbr.rel (0) target = $region17
    $region16: #{tpu_custom_call.1} parent=1 // pred_region
      _
    $region17: #{tpu_custom_call.1} parent=1 // pred_fallthru
      _
    // Predicated region
    $region18: #{tpu_custom_call.1} parent=1 // pred_check
      _
    $region19: #{tpu_custom_call.1} parent=1 // pred_check_branch
      %35 = sbr.rel (0) target = $region21
    $region20: #{tpu_custom_call.1} parent=1 // pred_region
      _
    $region21: #{tpu_custom_call.1} parent=1 // pred_fallthru
      _
    // Predicated region
    $region22: #{tpu_custom_call.1} parent=1 // pred_check
      _
    $region23: #{tpu_custom_call.1} parent=1 // pred_check_branch
      %37 = sbr.rel (0) target = $region25
    $region24: #{tpu_custom_call.1} parent=1 // pred_region
      _
    $region25: #{tpu_custom_call.1} parent=1 // pred_fallthru
      _
    // Predicated region
    $region26: #{tpu_custom_call.1} parent=1 // pred_check
      _
    $region27: #{tpu_custom_call.1} parent=1 // pred_check_branch
      %39 = sbr.rel (0) target = $region29
    $region28: #{tpu_custom_call.1} parent=1 // pred_region
      _
    $region29: #{tpu_custom_call.1} parent=1 // pred_fallthru
      _
    // Predicated region
    $region30: #{tpu_custom_call.1} parent=1 // pred_check
      _
    $region31: #{tpu_custom_call.1} parent=1 // pred_check_branch
      %41 = sbr.rel (0) target = $region33
    $region32: #{tpu_custom_call.1} parent=1 // pred_region
      _
    $region33: #{tpu_custom_call.1} parent=1 // pred_fallthru
      _
    // Predicated region
    $region34: #{tpu_custom_call.1} parent=1 // pred_check
      _
    $region35: #{tpu_custom_call.1} parent=1 // pred_check_branch
      %43 = sbr.rel (0) target = $region37
    $region36: #{tpu_custom_call.1} parent=1 // pred_region
      _
    $region37: #{tpu_custom_call.1} parent=1 // pred_fallthru
      _
    // Predicated region
    $region38: #{tpu_custom_call.1} parent=1 // pred_check
      _
    $region39: #{tpu_custom_call.1} parent=1 // pred_check_branch
      %45 = sbr.rel (0) target = $region41
    $region40: #{tpu_custom_call.1} parent=1 // pred_region
      %46 = dma.done [#allocation3], 1024
    $region41: #{tpu_custom_call.1} parent=1 // pred_fallthru
      _
    %v48 = vld [vmem:[%s0] sm:$0xff]
    %v49 = vld [vmem:[%s0 + $0x8] sm:$0xff]
    %v50 = vld [vmem:[%s0 + $0x10] sm:$0xff]
    %v51 = vld [vmem:[%s0 + $0x18] sm:$0xff]
    %52 = vrot.lane.b32.xlu0 %v48, 17
    %v53 = vpop.permute.xlu0 %52
    %54 = vrot.lane.b32.xlu0 %v49, 17
    %v55 = vpop.permute.xlu0 %54
    %56 = vrot.lane.b32.xlu0 %v50, 17
    %v57 = vpop.permute.xlu0 %56
    %58 = vrot.lane.b32.xlu0 %v51, 17
    %v59 = vpop.permute.xlu0 %58
    %v60 = vlaneseq
    %v61 = vand.u32 %v60, 127
    %vm62 = vcmp.lt.s32.totalorder %v61, 17
    %v63 = vsel %vm62, %v57, %v59
    %v64 = vsel %vm62, %v55, %v57
    %v65 = vsel %vm62, %v53, %v55
    %v66 = vsel %vm62, %v59, %v53
    %v67 = vld [vmem:[#allocation2] ss:$8 sm:$0xf]
    %v69 = vlaneseq
    %v70 = vshrl.u32 %v69, 7
    %v71 = vsub.s32 0, %v70
    %v72 = vrot.slane %v67, %v71
    %v73 = vlaneseq
    %v74 = vshrl.u32 %v73, 7
    %v75 = vsub.s32 1, %v74
    %v76 = vrot.slane %v67, %v75
    %v77 = vlaneseq
    %v78 = vshrl.u32 %v77, 7
    %v79 = vsub.s32 2, %v78
    %v80 = vrot.slane %v67, %v79
    %v81 = vlaneseq
    %v82 = vshrl.u32 %v81, 7
    %v83 = vsub.s32 3, %v82
    %v84 = vrot.slane %v67, %v83
    %v89 = vmul.f32 %v66, %v72
    %v90 = vmul.f32 %v65, %v76
    %v91 = vmul.f32 %v64, %v80
    %v92 = vmul.f32 %v63, %v84
    %93 = vrot.lane.b32.xlu0 %v48, 16
    %v94 = vpop.permute.xlu0 %93
    %95 = vrot.lane.b32.xlu0 %v49, 16
    %v96 = vpop.permute.xlu0 %95
    %97 = vrot.lane.b32.xlu0 %v50, 16
    %v98 = vpop.permute.xlu0 %97
    %99 = vrot.lane.b32.xlu0 %v51, 16
    %v100 = vpop.permute.xlu0 %99
    %vm101 = vcmp.lt.s32.totalorder %v61, 16
    %v102 = vsel %vm101, %v98, %v100
    %v103 = vsel %vm101, %v96, %v98
    %v104 = vsel %vm101, %v94, %v96
    %v105 = vsel %vm101, %v100, %v94
    %s106 = scalar_lea.vmem [#allocation2], 1
    %v107 = vld [vmem:[%s106] ss:$8 sm:$0xf]
    %v109 = vlaneseq
    %v110 = vshrl.u32 %v109, 7
    %v111 = vsub.s32 0, %v110
    %v112 = vrot.slane %v107, %v111
    %v113 = vlaneseq
    %v114 = vshrl.u32 %v113, 7
    %v115 = vsub.s32 1, %v114
    %v116 = vrot.slane %v107, %v115
    %v117 = vlaneseq
    %v118 = vshrl.u32 %v117, 7
    %v119 = vsub.s32 2, %v118
    %v120 = vrot.slane %v107, %v119
    %v121 = vlaneseq
    %v122 = vshrl.u32 %v121, 7
    %v123 = vsub.s32 3, %v122
    %v124 = vrot.slane %v107, %v123
    %v129 = vmul.f32 %v105, %v112
    %v130 = vmul.f32 %v104, %v116
    %v131 = vmul.f32 %v103, %v120
    %v132 = vmul.f32 %v102, %v124
    %133 = vrot.lane.b32.xlu0 %v48, 15
    %v134 = vpop.permute.xlu0 %133
    %135 = vrot.lane.b32.xlu0 %v49, 15
    %v136 = vpop.permute.xlu0 %135
    %137 = vrot.lane.b32.xlu0 %v50, 15
    %v138 = vpop.permute.xlu0 %137
    %139 = vrot.lane.b32.xlu0 %v51, 15
    %v140 = vpop.permute.xlu0 %139
    %vm141 = vcmp.lt.s32.totalorder %v61, 15
    %v142 = vsel %vm141, %v138, %v140
    %v143 = vsel %vm141, %v136, %v138
    %v144 = vsel %vm141, %v134, %v136
    %v145 = vsel %vm141, %v140, %v134
    %s146 = scalar_lea.vmem [#allocation2], 2
    %v147 = vld [vmem:[%s146] ss:$8 sm:$0xf]
    %v149 = vlaneseq
    %v150 = vshrl.u32 %v149, 7
    %v151 = vsub.s32 0, %v150
    %v152 = vrot.slane %v147, %v151
    %v153 = vlaneseq
    %v154 = vshrl.u32 %v153, 7
    %v155 = vsub.s32 1, %v154
    %v156 = vrot.slane %v147, %v155
    %v157 = vlaneseq
    %v158 = vshrl.u32 %v157, 7
    %v159 = vsub.s32 2, %v158
    %v160 = vrot.slane %v147, %v159
    %v161 = vlaneseq
    %v162 = vshrl.u32 %v161, 7
    %v163 = vsub.s32 3, %v162
    %v164 = vrot.slane %v147, %v163
    %v169 = vmul.f32 %v145, %v152
    %v170 = vmul.f32 %v144, %v156
    %v171 = vmul.f32 %v143, %v160
    %v172 = vmul.f32 %v142, %v164
    %173 = vrot.lane.b32.xlu0 %v48, 1
    %v174 = vpop.permute.xlu0 %173
    %175 = vrot.lane.b32.xlu0 %v49, 1
    %v176 = vpop.permute.xlu0 %175
    %177 = vrot.lane.b32.xlu0 %v50, 1
    %v178 = vpop.permute.xlu0 %177
    %179 = vrot.lane.b32.xlu0 %v51, 1
    %v180 = vpop.permute.xlu0 %179
    %vm181 = vcmp.lt.s32.totalorder %v61, 1
    %v182 = vsel %vm181, %v178, %v180
    %v183 = vsel %vm181, %v176, %v178
    %v184 = vsel %vm181, %v174, %v176
    %v185 = vsel %vm181, %v180, %v174
    %s186 = scalar_lea.vmem [#allocation2], 3
    %v187 = vld [vmem:[%s186] ss:$8 sm:$0xf]
    %v189 = vlaneseq
    %v190 = vshrl.u32 %v189, 7
    %v191 = vsub.s32 0, %v190
    %v192 = vrot.slane %v187, %v191
    %v193 = vlaneseq
    %v194 = vshrl.u32 %v193, 7
    %v195 = vsub.s32 1, %v194
    %v196 = vrot.slane %v187, %v195
    %v197 = vlaneseq
    %v198 = vshrl.u32 %v197, 7
    %v199 = vsub.s32 2, %v198
    %v200 = vrot.slane %v187, %v199
    %v201 = vlaneseq
    %v202 = vshrl.u32 %v201, 7
    %v203 = vsub.s32 3, %v202
    %v204 = vrot.slane %v187, %v203
    %v209 = vmul.f32 %v185, %v192
    %v210 = vmul.f32 %v184, %v196
    %v211 = vmul.f32 %v183, %v200
    %v212 = vmul.f32 %v182, %v204
    %213 = vrot.lane.b32.xlu0 %v48, 127
    %v214 = vpop.permute.xlu0 %213
    %215 = vrot.lane.b32.xlu0 %v49, 127
    %v216 = vpop.permute.xlu0 %215
    %217 = vrot.lane.b32.xlu0 %v50, 127
    %v218 = vpop.permute.xlu0 %217
    %219 = vrot.lane.b32.xlu0 %v51, 127
    %v220 = vpop.permute.xlu0 %219
    %vm221 = vcmp.lt.s32.totalorder %v61, 127
    %v222 = vsel %vm221, %v218, %v220
    %v223 = vsel %vm221, %v216, %v218
    %v224 = vsel %vm221, %v214, %v216
    %v225 = vsel %vm221, %v220, %v214
    %s226 = scalar_lea.vmem [#allocation2], 5
    %v227 = vld [vmem:[%s226] ss:$8 sm:$0xf]
    %v229 = vlaneseq
    %v230 = vshrl.u32 %v229, 7
    %v231 = vsub.s32 0, %v230
    %v232 = vrot.slane %v227, %v231
    %v233 = vlaneseq
    %v234 = vshrl.u32 %v233, 7
    %v235 = vsub.s32 1, %v234
    %v236 = vrot.slane %v227, %v235
    %v237 = vlaneseq
    %v238 = vshrl.u32 %v237, 7
    %v239 = vsub.s32 2, %v238
    %v240 = vrot.slane %v227, %v239
    %v241 = vlaneseq
    %v242 = vshrl.u32 %v241, 7
    %v243 = vsub.s32 3, %v242
    %v244 = vrot.slane %v227, %v243
    %v249 = vmul.f32 %v224, %v232
    %v250 = vmul.f32 %v223, %v236
    %v251 = vmul.f32 %v222, %v240
    %v252 = vmul.f32 %v225, %v244
    %253 = vrot.lane.b32.xlu0 %v48, 113
    %v254 = vpop.permute.xlu0 %253
    %255 = vrot.lane.b32.xlu0 %v49, 113
    %v256 = vpop.permute.xlu0 %255
    %257 = vrot.lane.b32.xlu0 %v50, 113
    %v258 = vpop.permute.xlu0 %257
    %259 = vrot.lane.b32.xlu0 %v51, 113
    %v260 = vpop.permute.xlu0 %259
    %vm261 = vcmp.lt.s32.totalorder %v61, 113
    %v262 = vsel %vm261, %v258, %v260
    %v263 = vsel %vm261, %v256, %v258
    %v264 = vsel %vm261, %v254, %v256
    %v265 = vsel %vm261, %v260, %v254
    %s266 = scalar_lea.vmem [#allocation2], 6
    %v267 = vld [vmem:[%s266] ss:$8 sm:$0xf]
    %v269 = vlaneseq
    %v270 = vshrl.u32 %v269, 7
    %v271 = vsub.s32 0, %v270
    %v272 = vrot.slane %v267, %v271
    %v273 = vlaneseq
    %v274 = vshrl.u32 %v273, 7
    %v275 = vsub.s32 1, %v274
    %v276 = vrot.slane %v267, %v275
    %v277 = vlaneseq
    %v278 = vshrl.u32 %v277, 7
    %v279 = vsub.s32 2, %v278
    %v280 = vrot.slane %v267, %v279
    %v281 = vlaneseq
    %v282 = vshrl.u32 %v281, 7
    %v283 = vsub.s32 3, %v282
    %v284 = vrot.slane %v267, %v283
    %v289 = vmul.f32 %v264, %v272
    %v290 = vmul.f32 %v263, %v276
    %v291 = vmul.f32 %v262, %v280
    %v292 = vmul.f32 %v265, %v284
    %293 = vrot.lane.b32.xlu0 %v48, 112
    %v294 = vpop.permute.xlu0 %293
    %295 = vrot.lane.b32.xlu0 %v49, 112
    %v296 = vpop.permute.xlu0 %295
    %297 = vrot.lane.b32.xlu0 %v50, 112
    %v298 = vpop.permute.xlu0 %297
    %299 = vrot.lane.b32.xlu0 %v51, 112
    %v300 = vpop.permute.xlu0 %299
    %vm301 = vcmp.lt.s32.totalorder %v61, 112
    %v302 = vsel %vm301, %v298, %v300
    %v303 = vsel %vm301, %v296, %v298
    %v304 = vsel %vm301, %v294, %v296
    %v305 = vsel %vm301, %v300, %v294
    %s306 = scalar_lea.vmem [#allocation2], 7
    %v307 = vld [vmem:[%s306] ss:$8 sm:$0xf]
    %v309 = vlaneseq
    %v310 = vshrl.u32 %v309, 7
    %v311 = vsub.s32 0, %v310
    %v312 = vrot.slane %v307, %v311
    %v313 = vlaneseq
    %v314 = vshrl.u32 %v313, 7
    %v315 = vsub.s32 1, %v314
    %v316 = vrot.slane %v307, %v315
    %v317 = vlaneseq
    %v318 = vshrl.u32 %v317, 7
    %v319 = vsub.s32 2, %v318
    %v320 = vrot.slane %v307, %v319
    %v321 = vlaneseq
    %v322 = vshrl.u32 %v321, 7
    %v323 = vsub.s32 3, %v322
    %v324 = vrot.slane %v307, %v323
    %v329 = vmul.f32 %v304, %v312
    %v330 = vmul.f32 %v303, %v316
    %v331 = vmul.f32 %v302, %v320
    %v332 = vmul.f32 %v305, %v324
    %333 = vrot.lane.b32.xlu0 %v48, 111
    %v334 = vpop.permute.xlu0 %333
    %335 = vrot.lane.b32.xlu0 %v49, 111
    %v336 = vpop.permute.xlu0 %335
    %337 = vrot.lane.b32.xlu0 %v50, 111
    %v338 = vpop.permute.xlu0 %337
    %339 = vrot.lane.b32.xlu0 %v51, 111
    %v340 = vpop.permute.xlu0 %339
    %vm341 = vcmp.lt.s32.totalorder %v61, 111
    %v342 = vsel %vm341, %v338, %v340
    %v343 = vsel %vm341, %v336, %v338
    %v344 = vsel %vm341, %v334, %v336
    %v345 = vsel %vm341, %v340, %v334
    %s346 = scalar_lea.vmem [#allocation2], 32
    %v347 = vld [vmem:[%s346] ss:$8 sm:$0xf]
    %v349 = vlaneseq
    %v350 = vshrl.u32 %v349, 7
    %v351 = vsub.s32 0, %v350
    %v352 = vrot.slane %v347, %v351
    %v353 = vlaneseq
    %v354 = vshrl.u32 %v353, 7
    %v355 = vsub.s32 1, %v354
    %v356 = vrot.slane %v347, %v355
    %v357 = vlaneseq
    %v358 = vshrl.u32 %v357, 7
    %v359 = vsub.s32 2, %v358
    %v360 = vrot.slane %v347, %v359
    %v361 = vlaneseq
    %v362 = vshrl.u32 %v361, 7
    %v363 = vsub.s32 3, %v362
    %v364 = vrot.slane %v347, %v363
    %v369 = vmul.f32 %v344, %v352
    %v370 = vmul.f32 %v343, %v356
    %v371 = vmul.f32 %v342, %v360
    %v372 = vmul.f32 %v345, %v364
    %v373 = vpack.c.bf16 %v129, %v89
    %v374 = vpack.c.bf16 %v130, %v90
    %v375 = vpack.c.bf16 %v131, %v91
    %v376 = vpack.c.bf16 %v132, %v92
    %v377 = vpack.c.bf16 %v209, %v169
    %v378 = vpack.c.bf16 %v210, %v170
    %v379 = vpack.c.bf16 %v211, %v171
    %v380 = vpack.c.bf16 %v212, %v172
    %v381 = vpack.c.bf16 %v249, %v48
    %v382 = vpack.c.bf16 %v250, %v49
    %v383 = vpack.c.bf16 %v251, %v50
    %v384 = vpack.c.bf16 %v252, %v51
    %v385 = vpack.c.bf16 %v329, %v289
    %v386 = vpack.c.bf16 %v330, %v290
    %v387 = vpack.c.bf16 %v331, %v291
    %v388 = vpack.c.bf16 %v332, %v292
    %v389 = vpack.c.bf16 %v369, %v369
    %v390 = vpack.c.bf16 %v370, %v370
    %v391 = vpack.c.bf16 %v371, %v371
    %v392 = vpack.c.bf16 %v372, %v372
    %v393 = vld [vmem:[%s2] sm:$0xf]
    %v394 = vld [vmem:[%s2 + $0x4] sm:$0xf]
    %v397 = vunpack.c.l.b16 %v393
    %v398 = vunpack.c.l.b16 %v394
    %v399 = vpack.c.b16 %v398, %v397
    %vm400 = vcmask 588800
    %v402 = vsel %vm400, %v399, 0
    %vm404 = vcmask 1043456
    %v406 = vsel %vm404, %v389, 0
    %v409 = vsel %vm404, %v390, 0
    %v412 = vsel %vm404, %v391, 0
    %v415 = vsel %vm404, %v392, 0
    %417 = vmatprep.subr.bf16.mxu0 %v374
    %418 = vmatpush1.bf16.msra.mxu0 %v373
    %419 = vmatprep.subr.bf16.mxu0 %v378
    %420 = vmatpush1.bf16.msra.mxu0 %v377
    %421 = vmatprep.subr.bf16.mxu0 %v382
    %422 = vmatpush1.bf16.msra.mxu0 %v381
    %423 = vmatprep.subr.bf16.mxu0 %v386
    %424 = vmatpush1.bf16.msra.mxu0 %v385
    %425 = vmatprep.subr.bf16.mxu0 %v409
    %426 = vmatpush1.bf16.msra.mxu0 %v406
    %427 = vmatprep.subr.bf16.mxu0 0
    %428 = vmatpush1.bf16.msra.mxu0 0
    %429 = vmatprep.subr.bf16.mxu0 0
    %430 = vmatpush1.bf16.msra.mxu0 0
    %431 = vmatprep.subr.bf16.mxu0 0
    %432 = vmatpush1.bf16.msra.mxu0 0
    %433 = vmatprep.subr.bf16.mxu0 0
    %434 = vmatpush1.bf16.msra.mxu0 0
    %435 = vmatprep.subr.bf16.mxu0 0
    %436 = vmatpush1.bf16.msra.mxu0 0
    %437 = vmatprep.subr.bf16.mxu0 0
    %438 = vmatpush1.bf16.msra.mxu0 0
    %439 = vmatprep.subr.bf16.mxu0 0
    %440 = vmatpush1.bf16.msra.mxu0 0
    %441 = vmatprep.subr.bf16.mxu0 0
    %442 = vmatpush1.bf16.msra.mxu0 0
    %443 = vmatprep.subr.bf16.mxu0 0
    %444 = vmatpush1.bf16.msra.mxu0 0
    %445 = vmatprep.subr.bf16.mxu0 0
    %446 = vmatpush1.bf16.msra.mxu0 0
    %447 = vmatprep.subr.bf16.mxu0 0
    %448 = vmatpush1.bf16.msra.mxu0 0
    %449 = vmatprep.mubr.bf16.mxu0 0
    %450 = vmatmul.mubr.bf16.gmra.mrb[0].mxu0 %v402
    %v451 = vpop.f32.mrb[0].mxu0
    %v452 = vadd.f32 0.0, %v451
    %v453 = vpop.f32.mrb[0].mxu0
    %v454 = vadd.f32 0.0, %v453
    %v455 = vpop.f32.mrb[0].mxu0
    %v456 = vadd.f32 0.0, %v455
    %v457 = vpop.f32.mrb[0].mxu0
    %v458 = vadd.f32 0.0, %v457
    %459 = vdwg.mxu0
    %460 = vmatprep.subr.bf16.mxu0 %v376
    %461 = vmatpush1.bf16.msra.mxu0 %v375
    %462 = vmatprep.subr.bf16.mxu0 %v380
    %463 = vmatpush1.bf16.msra.mxu0 %v379
    %464 = vmatprep.subr.bf16.mxu0 %v384
    %465 = vmatpush1.bf16.msra.mxu0 %v383
    %466 = vmatprep.subr.bf16.mxu0 %v388
    %467 = vmatpush1.bf16.msra.mxu0 %v387
    %468 = vmatprep.subr.bf16.mxu0 %v415
    %469 = vmatpush1.bf16.msra.mxu0 %v412
    %470 = vmatprep.subr.bf16.mxu0 0
    %471 = vmatpush1.bf16.msra.mxu0 0
    %472 = vmatprep.subr.bf16.mxu0 0
    %473 = vmatpush1.bf16.msra.mxu0 0
    %474 = vmatprep.subr.bf16.mxu0 0
    %475 = vmatpush1.bf16.msra.mxu0 0
    %476 = vmatprep.subr.bf16.mxu0 0
    %477 = vmatpush1.bf16.msra.mxu0 0
    %478 = vmatprep.subr.bf16.mxu0 0
    %479 = vmatpush1.bf16.msra.mxu0 0
    %480 = vmatprep.subr.bf16.mxu0 0
    %481 = vmatpush1.bf16.msra.mxu0 0
    %482 = vmatprep.subr.bf16.mxu0 0
    %483 = vmatpush1.bf16.msra.mxu0 0
    %484 = vmatprep.subr.bf16.mxu0 0
    %485 = vmatpush1.bf16.msra.mxu0 0
    %486 = vmatprep.subr.bf16.mxu0 0
    %487 = vmatpush1.bf16.msra.mxu0 0
    %488 = vmatprep.subr.bf16.mxu0 0
    %489 = vmatpush1.bf16.msra.mxu0 0
    %490 = vmatprep.subr.bf16.mxu0 0
    %491 = vmatpush1.bf16.msra.mxu0 0
    %492 = vmatprep.mubr.bf16.mxu0 0
    %493 = vmatmul.mubr.bf16.gmra.mrb[0].mxu0 %v402
    %v494 = vpop.f32.mrb[0].mxu0
    %v495 = vadd.f32 0.0, %v494
    %v496 = vpop.f32.mrb[0].mxu0
    %v497 = vadd.f32 0.0, %v496
    %v498 = vpop.f32.mrb[0].mxu0
    %v499 = vadd.f32 0.0, %v498
    %v500 = vpop.f32.mrb[0].mxu0
    %v501 = vadd.f32 0.0, %v500
    %502 = vdwg.mxu0
    %v503 = vadd.f32 %v452, %v454
    %v504 = vadd.f32 %v503, %v495
    %v505 = vadd.f32 %v504, %v497
    %506 = vadd.xlane.f32.xlu0 %v505
    %v507 = vpop.xlane.xlu0 %506
    %v508 = vmul.f32 %v507, 0.001953125
    %v509 = vmul.f32 %v452, %v452
    %v510 = vmul.f32 %v454, %v454
    %v511 = vmul.f32 %v495, %v495
    %v512 = vmul.f32 %v497, %v497
    %v513 = vadd.f32 %v509, %v510
    %v514 = vadd.f32 %v513, %v511
    %v515 = vadd.f32 %v514, %v512
    %516 = vadd.xlane.f32.xlu0 %v515
    %v517 = vpop.xlane.xlu0 %516
    %v518 = vmul.f32 %v517, 0.001953125
    %v519 = vmul.f32 %v508, %v508
    %v520 = vsub.f32 %v518, %v519
    %v521 = vld [vmem:[%s3] sm:$0xff]
    %v522 = vadd.f32 %v520, 1e-05
    %v523 = vrsqrt.pop %v522
    %v524 = vmul.f32 %v521, %v523
    %v525 = vld [vmem:[%s4] sm:$0xff]
    %v526 = vmul.f32 %v508, %v524
    %v527 = vsub.f32 %v525, %v526
    %529 = vset.pattern.permute.xlu0 0
    %530 = vperm.xlu0 %529, %v524
    %v531 = vpop.permute.xlu0 %530
    %v533 = vmul.f32 %v452, %v531
    %v534 = vmul.f32 %v454, %v531
    %v535 = vmul.f32 %v495, %v531
    %v536 = vmul.f32 %v497, %v531
    %538 = vset.pattern.permute.xlu0 0
    %539 = vperm.xlu0 %538, %v527
    %v540 = vpop.permute.xlu0 %539
    %v542 = vadd.f32 %v533, %v540
    %v543 = vadd.f32 %v534, %v540
    %v544 = vadd.f32 %v535, %v540
    %v545 = vadd.f32 %v536, %v540
    %v546 = vmax.f32 %v542, 0.0
    %v547 = vmax.f32 %v543, 0.0
    %v548 = vmax.f32 %v544, 0.0
    %v549 = vmax.f32 %v545, 0.0
    %v550 = vld [vmem:[%s5] sm:$0xf]
    %551 = vrot.lane.b32.xlu0 %v546, 17
    %v552 = vpop.permute.xlu0 %551
    %553 = vrot.lane.b32.xlu0 %v547, 17
    %v554 = vpop.permute.xlu0 %553
    %555 = vrot.lane.b32.xlu0 %v548, 17
    %v556 = vpop.permute.xlu0 %555
    %557 = vrot.lane.b32.xlu0 %v549, 17
    %v558 = vpop.permute.xlu0 %557
    %v559 = vsel %vm62, %v556, %v558
    %v560 = vsel %vm62, %v554, %v556
    %v561 = vsel %vm62, %v552, %v554
    %v562 = vsel %vm62, %v558, %v552
    %v563 = vmul.f32 %v562, %v72
    %v564 = vmul.f32 %v561, %v76
    %v565 = vmul.f32 %v560, %v80
    %v566 = vmul.f32 %v559, %v84
    %567 = vrot.lane.b32.xlu0 %v546, 16
    %v568 = vpop.permute.xlu0 %567
    %569 = vrot.lane.b32.xlu0 %v547, 16
    %v570 = vpop.permute.xlu0 %569
    %571 = vrot.lane.b32.xlu0 %v548, 16
    %v572 = vpop.permute.xlu0 %571
    %573 = vrot.lane.b32.xlu0 %v549, 16
    %v574 = vpop.permute.xlu0 %573
    %v575 = vsel %vm101, %v572, %v574
    %v576 = vsel %vm101, %v570, %v572
    %v577 = vsel %vm101, %v568, %v570
    %v578 = vsel %vm101, %v574, %v568
    %v579 = vmul.f32 %v578, %v112
    %v580 = vmul.f32 %v577, %v116
    %v581 = vmul.f32 %v576, %v120
    %v582 = vmul.f32 %v575, %v124
    %583 = vrot.lane.b32.xlu0 %v546, 15
    %v584 = vpop.permute.xlu0 %583
    %585 = vrot.lane.b32.xlu0 %v547, 15
    %v586 = vpop.permute.xlu0 %585
    %587 = vrot.lane.b32.xlu0 %v548, 15
    %v588 = vpop.permute.xlu0 %587
    %589 = vrot.lane.b32.xlu0 %v549, 15
    %v590 = vpop.permute.xlu0 %589
    %v591 = vsel %vm141, %v588, %v590
    %v592 = vsel %vm141, %v586, %v588
    %v593 = vsel %vm141, %v584, %v586
    %v594 = vsel %vm141, %v590, %v584
    %v595 = vmul.f32 %v594, %v152
    %v596 = vmul.f32 %v593, %v156
    %v597 = vmul.f32 %v592, %v160
    %v598 = vmul.f32 %v591, %v164
    %599 = vrot.lane.b32.xlu0 %v546, 1
    %v600 = vpop.permute.xlu0 %599
    %601 = vrot.lane.b32.xlu0 %v547, 1
    %v602 = vpop.permute.xlu0 %601
    %603 = vrot.lane.b32.xlu0 %v548, 1
    %v604 = vpop.permute.xlu0 %603
    %605 = vrot.lane.b32.xlu0 %v549, 1
    %v606 = vpop.permute.xlu0 %605
    %v607 = vsel %vm181, %v604, %v606
    %v608 = vsel %vm181, %v602, %v604
    %v609 = vsel %vm181, %v600, %v602
    %v610 = vsel %vm181, %v606, %v600
    %v611 = vmul.f32 %v610, %v192
    %v612 = vmul.f32 %v609, %v196
    %v613 = vmul.f32 %v608, %v200
    %v614 = vmul.f32 %v607, %v204
    %615 = vrot.lane.b32.xlu0 %v546, 127
    %v616 = vpop.permute.xlu0 %615
    %617 = vrot.lane.b32.xlu0 %v547, 127
    %v618 = vpop.permute.xlu0 %617
    %619 = vrot.lane.b32.xlu0 %v548, 127
    %v620 = vpop.permute.xlu0 %619
    %621 = vrot.lane.b32.xlu0 %v549, 127
    %v622 = vpop.permute.xlu0 %621
    %v623 = vsel %vm221, %v620, %v622
    %v624 = vsel %vm221, %v618, %v620
    %v625 = vsel %vm221, %v616, %v618
    %v626 = vsel %vm221, %v622, %v616
    %v627 = vmul.f32 %v625, %v232
    %v628 = vmul.f32 %v624, %v236
    %v629 = vmul.f32 %v623, %v240
    %v630 = vmul.f32 %v626, %v244
    %631 = vrot.lane.b32.xlu0 %v546, 113
    %v632 = vpop.permute.xlu0 %631
    %633 = vrot.lane.b32.xlu0 %v547, 113
    %v634 = vpop.permute.xlu0 %633
    %635 = vrot.lane.b32.xlu0 %v548, 113
    %v636 = vpop.permute.xlu0 %635
    %637 = vrot.lane.b32.xlu0 %v549, 113
    %v638 = vpop.permute.xlu0 %637
    %v639 = vsel %vm261, %v636, %v638
    %v640 = vsel %vm261, %v634, %v636
    %v641 = vsel %vm261, %v632, %v634
    %v642 = vsel %vm261, %v638, %v632
    %v643 = vmul.f32 %v641, %v272
    %v644 = vmul.f32 %v640, %v276
    %v645 = vmul.f32 %v639, %v280
    %v646 = vmul.f32 %v642, %v284
    %647 = vrot.lane.b32.xlu0 %v546, 112
    %v648 = vpop.permute.xlu0 %647
    %649 = vrot.lane.b32.xlu0 %v547, 112
    %v650 = vpop.permute.xlu0 %649
    %651 = vrot.lane.b32.xlu0 %v548, 112
    %v652 = vpop.permute.xlu0 %651
    %653 = vrot.lane.b32.xlu0 %v549, 112
    %v654 = vpop.permute.xlu0 %653
    %v655 = vsel %vm301, %v652, %v654
    %v656 = vsel %vm301, %v650, %v652
    %v657 = vsel %vm301, %v648, %v650
    %v658 = vsel %vm301, %v654, %v648
    %v659 = vmul.f32 %v657, %v312
    %v660 = vmul.f32 %v656, %v316
    %v661 = vmul.f32 %v655, %v320
    %v662 = vmul.f32 %v658, %v324
    %663 = vrot.lane.b32.xlu0 %v546, 111
    %v664 = vpop.permute.xlu0 %663
    %665 = vrot.lane.b32.xlu0 %v547, 111
    %v666 = vpop.permute.xlu0 %665
    %667 = vrot.lane.b32.xlu0 %v548, 111
    %v668 = vpop.permute.xlu0 %667
    %669 = vrot.lane.b32.xlu0 %v549, 111
    %v670 = vpop.permute.xlu0 %669
    %v671 = vsel %vm341, %v668, %v670
    %v672 = vsel %vm341, %v666, %v668
    %v673 = vsel %vm341, %v664, %v666
    %v674 = vsel %vm341, %v670, %v664
    %v675 = vmul.f32 %v673, %v352
    %v676 = vmul.f32 %v672, %v356
    %v677 = vmul.f32 %v671, %v360
    %v678 = vmul.f32 %v674, %v364
    %v679 = vpack.c.bf16 %v579, %v563
    %v680 = vpack.c.bf16 %v580, %v564
    %v681 = vpack.c.bf16 %v581, %v565
    %v682 = vpack.c.bf16 %v582, %v566
    %v683 = vpack.c.bf16 %v611, %v595
    %v684 = vpack.c.bf16 %v612, %v596
    %v685 = vpack.c.bf16 %v613, %v597
    %v686 = vpack.c.bf16 %v614, %v598
    %v687 = vpack.c.bf16 %v627, %v546
    %v688 = vpack.c.bf16 %v628, %v547
    %v689 = vpack.c.bf16 %v629, %v548
    %v690 = vpack.c.bf16 %v630, %v549
    %v691 = vpack.c.bf16 %v659, %v643
    %v692 = vpack.c.bf16 %v660, %v644
    %v693 = vpack.c.bf16 %v661, %v645
    %v694 = vpack.c.bf16 %v662, %v646
    %v695 = vpack.c.bf16 %v675, %v675
    %v696 = vpack.c.bf16 %v676, %v676
    %v697 = vpack.c.bf16 %v677, %v677
    %v698 = vpack.c.bf16 %v678, %v678
    %v700 = vsel %vm400, %v550, 0
    %v703 = vsel %vm404, %v695, 0
    %v706 = vsel %vm404, %v696, 0
    %v709 = vsel %vm404, %v697, 0
    %v712 = vsel %vm404, %v698, 0
    %714 = vmatprep.subr.bf16.mxu0 %v680
    %715 = vmatpush1.bf16.msra.mxu0 %v679
    %716 = vmatprep.subr.bf16.mxu0 %v684
    %717 = vmatpush1.bf16.msra.mxu0 %v683
    %718 = vmatprep.subr.bf16.mxu0 %v688
    %719 = vmatpush1.bf16.msra.mxu0 %v687
    %720 = vmatprep.subr.bf16.mxu0 %v692
    %721 = vmatpush1.bf16.msra.mxu0 %v691
    %722 = vmatprep.subr.bf16.mxu0 %v706
    %723 = vmatpush1.bf16.msra.mxu0 %v703
    %724 = vmatprep.subr.bf16.mxu0 0
    %725 = vmatpush1.bf16.msra.mxu0 0
    %726 = vmatprep.subr.bf16.mxu0 0
    %727 = vmatpush1.bf16.msra.mxu0 0
    %728 = vmatprep.subr.bf16.mxu0 0
    %729 = vmatpush1.bf16.msra.mxu0 0
    %730 = vmatprep.subr.bf16.mxu0 0
    %731 = vmatpush1.bf16.msra.mxu0 0
    %732 = vmatprep.subr.bf16.mxu0 0
    %733 = vmatpush1.bf16.msra.mxu0 0
    %734 = vmatprep.subr.bf16.mxu0 0
    %735 = vmatpush1.bf16.msra.mxu0 0
    %736 = vmatprep.subr.bf16.mxu0 0
    %737 = vmatpush1.bf16.msra.mxu0 0
    %738 = vmatprep.subr.bf16.mxu0 0
    %739 = vmatpush1.bf16.msra.mxu0 0
    %740 = vmatprep.subr.bf16.mxu0 0
    %741 = vmatpush1.bf16.msra.mxu0 0
    %742 = vmatprep.subr.bf16.mxu0 0
    %743 = vmatpush1.bf16.msra.mxu0 0
    %744 = vmatprep.subr.bf16.mxu0 0
    %745 = vmatpush1.bf16.msra.mxu0 0
    %746 = vmatprep.mubr.bf16.mxu0 0
    %747 = vmatmul.mubr.bf16.gmra.mrb[0].mxu0 %v700
    %v748 = vpop.f32.mrb[0].mxu0
    %v749 = vadd.f32 0.0, %v748
    %v750 = vpop.f32.mrb[0].mxu0
    %v751 = vadd.f32 0.0, %v750
    %v752 = vpop.f32.mrb[0].mxu0
    %v753 = vpop.f32.mrb[0].mxu0
    %754 = vdwg.mxu0
    %755 = vmatprep.subr.bf16.mxu0 %v682
    %756 = vmatpush1.bf16.msra.mxu0 %v681
    %757 = vmatprep.subr.bf16.mxu0 %v686
    %758 = vmatpush1.bf16.msra.mxu0 %v685
    %759 = vmatprep.subr.bf16.mxu0 %v690
    %760 = vmatpush1.bf16.msra.mxu0 %v689
    %761 = vmatprep.subr.bf16.mxu0 %v694
    %762 = vmatpush1.bf16.msra.mxu0 %v693
    %763 = vmatprep.subr.bf16.mxu0 %v712
    %764 = vmatpush1.bf16.msra.mxu0 %v709
    %765 = vmatprep.subr.bf16.mxu0 0
    %766 = vmatpush1.bf16.msra.mxu0 0
    %767 = vmatprep.subr.bf16.mxu0 0
    %768 = vmatpush1.bf16.msra.mxu0 0
    %769 = vmatprep.subr.bf16.mxu0 0
    %770 = vmatpush1.bf16.msra.mxu0 0
    %771 = vmatprep.subr.bf16.mxu0 0
    %772 = vmatpush1.bf16.msra.mxu0 0
    %773 = vmatprep.subr.bf16.mxu0 0
    %774 = vmatpush1.bf16.msra.mxu0 0
    %775 = vmatprep.subr.bf16.mxu0 0
    %776 = vmatpush1.bf16.msra.mxu0 0
    %777 = vmatprep.subr.bf16.mxu0 0
    %778 = vmatpush1.bf16.msra.mxu0 0
    %779 = vmatprep.subr.bf16.mxu0 0
    %780 = vmatpush1.bf16.msra.mxu0 0
    %781 = vmatprep.subr.bf16.mxu0 0
    %782 = vmatpush1.bf16.msra.mxu0 0
    %783 = vmatprep.subr.bf16.mxu0 0
    %784 = vmatpush1.bf16.msra.mxu0 0
    %785 = vmatprep.subr.bf16.mxu0 0
    %786 = vmatpush1.bf16.msra.mxu0 0
    %787 = vmatprep.mubr.bf16.mxu0 0
    %788 = vmatmul.mubr.bf16.gmra.mrb[0].mxu0 %v700
    %v789 = vpop.f32.mrb[0].mxu0
    %v790 = vadd.f32 0.0, %v789
    %v791 = vpop.f32.mrb[0].mxu0
    %v792 = vadd.f32 0.0, %v791
    %v793 = vpop.f32.mrb[0].mxu0
    %v794 = vpop.f32.mrb[0].mxu0
    %795 = vdwg.mxu0
    %v796 = vadd.f32 %v749, %v751
    %v797 = vadd.f32 %v796, %v790
    %v798 = vadd.f32 %v797, %v792
    %799 = vadd.xlane.f32.xlu0 %v798
    %v800 = vpop.xlane.xlu0 %799
    %v801 = vmul.f32 %v800, 0.001953125
    %v802 = vmul.f32 %v749, %v749
    %v803 = vmul.f32 %v751, %v751
    %v804 = vmul.f32 %v790, %v790
    %v805 = vmul.f32 %v792, %v792
    %v806 = vadd.f32 %v802, %v803
    %v807 = vadd.f32 %v806, %v804
    %v808 = vadd.f32 %v807, %v805
    %809 = vadd.xlane.f32.xlu0 %v808
    %v810 = vpop.xlane.xlu0 %809
    %v811 = vmul.f32 %v810, 0.001953125
    %v812 = vmul.f32 %v801, %v801
    %v813 = vsub.f32 %v811, %v812
    %v814 = vld [vmem:[%s6] sm:$0xff]
    %v815 = vadd.f32 %v813, 1e-05
    %v816 = vrsqrt.pop %v815
    %v817 = vmul.f32 %v814, %v816
    %v818 = vld [vmem:[%s7] sm:$0xff]
    %v819 = vmul.f32 %v801, %v817
    %v820 = vsub.f32 %v818, %v819
    %822 = vset.pattern.permute.xlu0 0
    %823 = vperm.xlu0 %822, %v817
    %v824 = vpop.permute.xlu0 %823
    %v826 = vmul.f32 %v749, %v824
    %v827 = vmul.f32 %v751, %v824
    %v828 = vmul.f32 %v790, %v824
    %v829 = vmul.f32 %v792, %v824
    %831 = vset.pattern.permute.xlu0 0
    %832 = vperm.xlu0 %831, %v820
    %v833 = vpop.permute.xlu0 %832
    %v835 = vadd.f32 %v826, %v833
    %v836 = vadd.f32 %v827, %v833
    %v837 = vadd.f32 %v828, %v833
    %v838 = vadd.f32 %v829, %v833
    %v839 = vld [vmem:[%s8] sm:$0xff]
    %841 = vset.pattern.permute.xlu0 0
    %842 = vperm.xlu0 %841, %v839
    %v843 = vpop.permute.xlu0 %842
    %v845 = vadd.f32 %v456, %v843
    %v846 = vadd.f32 %v458, %v843
    %v847 = vadd.f32 %v499, %v843
    %v848 = vadd.f32 %v501, %v843
    %v849 = vadd.f32 %v835, %v845
    %v850 = vadd.f32 %v836, %v846
    %v851 = vadd.f32 %v837, %v847
    %v852 = vadd.f32 %v838, %v848
    %v853 = vmax.f32 %v849, 0.0
    %v854 = vmax.f32 %v850, 0.0
    %v855 = vmax.f32 %v851, 0.0
    %v856 = vmax.f32 %v852, 0.0
    %857 = vst [vmem:[#allocation5] sm:$0xff] %v853
    %858 = vst [vmem:[#allocation5 + $0x8] sm:$0xff] %v854
    %859 = vst [vmem:[#allocation5 + $0x10] sm:$0xff] %v855
    %860 = vst [vmem:[#allocation5 + $0x18] sm:$0xff] %v856
    // Predicated region
    $region42: #{tpu_custom_call.1} parent=1 // pred_check
      _
    $region43: #{tpu_custom_call.1} parent=1 // pred_check_branch
      %862 = sbr.rel (0) target = $region45
    $region44: #{tpu_custom_call.1} parent=1 // pred_region
      %s864 = ssub.s32 512, 512
      %865 = vsyncadd [#allocation4], %s864
      %s867 = sshll.u32 [#allocation5], 4
      %s868 = int_to_ptr.vmem [resolvable:$true] %s867
      %870 = dma.vmem_to_hbm [thread:$0]  %s868, 512, %s9, [#allocation4]
    $region45: #{tpu_custom_call.1} parent=1 // pred_fallthru
      _
    // Predicated region
    $region46: #{tpu_custom_call.1} parent=1 // pred_check
      _
    $region47: #{tpu_custom_call.1} parent=1 // pred_check_branch
      %872 = sbr.rel (0) target = $region49
    $region48: #{tpu_custom_call.1} parent=1 // pred_region
      %873 = dma.done [#allocation4], 512
    $region49: #{tpu_custom_call.1} parent=1 // pred_fallthru
      _
    %874 = vsyncpa [#allocation3], 1
    %875 = vsyncpa [#allocation4], 1

</llo_original>
